<compile_context>
chip_gen: v7x
topology: tpu7x:2x2x1
jax: 0.10.0
libtpu: 0.0.40
codegen_flags: <defaults>
</compile_context>

<pallas_src>
import jax
import jax.numpy as jnp
from jax.experimental import pallas as pl
from jax.experimental.pallas import tpu as pltpu


def _round_up(n, m):
    return ((n + m - 1) // m) * m


def _mlp_kernel(x_ref,
                w1_ref, b1_ref,
                w2_ref, b2_ref,
                w3_ref, b3_ref,
                w4_ref, b4_ref,
                o_ref):
    """Fused 4-layer MLP forward for one batch tile.

    x_ref:  [IN_PAD,  Bt]   (batch on lanes)
    w_l:    [out_pad, in_pad]   b_l: [out_pad, 1]
    o_ref:  [OUT_PAD, Bt]
    """
    x = x_ref[...].astype(jnp.float32)

    h = jnp.dot(w1_ref[...], x, preferred_element_type=jnp.float32) + b1_ref[...]
    h = jnp.maximum(h, 0.0)

    h = jnp.dot(w2_ref[...], h, preferred_element_type=jnp.float32) + b2_ref[...]
    h = jnp.maximum(h, 0.0)

    h = jnp.dot(w3_ref[...], h, preferred_element_type=jnp.float32) + b3_ref[...]
    h = jnp.maximum(h, 0.0)

    out = jnp.dot(w4_ref[...], h, preferred_element_type=jnp.float32) + b4_ref[...]
    o_ref[...] = out.astype(o_ref.dtype)


def mlp_forward(x, params, *, batch_tile=None):
    """Run the fused MLP Pallas kernel.

    x:      [B, 2]  float32 (state = [x, t])
    params: dict with PyTorch-layout weights w_l [out, in], biases b_l [out]
    returns [B, 2] float32
    """
    w1, b1 = params["w1"], params["b1"]
    w2, b2 = params["w2"], params["b2"]
    w3, b3 = params["w3"], params["b3"]
    w4, b4 = params["w4"], params["b4"]

    B, in_dim = x.shape
    H = w1.shape[0]
    out_dim = w4.shape[0]

    f32 = jnp.float32
    IN_PAD = 8                       # pad 2 -> 8 sublanes
    OUT_PAD = 8                      # pad 2 -> 8 sublanes (sliced off after)
    H_PAD = _round_up(H, 128)        # full MXU / lane width hidden layers

    # Lane-dense batch tile: multiple of 128, >= 2 grid steps when B allows,
    # capped so double-buffered tiles stay far under the scoped-VMEM limit.
    if batch_tile is None:
        batch_tile = max(128, min(2048, _round_up((B + 1) // 2, 128)))
    else:
        batch_tile = _round_up(max(batch_tile, 128), 128)
    B_pad = _round_up(B, batch_tile)
    grid = (B_pad // batch_tile,)

    # ---- wrapper-side layout prep (cheap XLA ops) ----
    # activations: [in, B] with batch on lanes, zero-padded.
    x_t = jnp.zeros((IN_PAD, B_pad), f32).at[:in_dim, :B].set(x.T.astype(f32))

    # zero-padded parameters: padded hidden units get zero weight + zero bias,
    # so relu(0) = 0 and they contribute nothing downstream -> exact result.
    w1p = jnp.zeros((H_PAD, IN_PAD), f32).at[:H, :in_dim].set(w1.astype(f32))
    b1p = jnp.zeros((H_PAD, 1), f32).at[:H, 0].set(b1.astype(f32))
    w2p = jnp.zeros((H_PAD, H_PAD), f32).at[:H, :H].set(w2.astype(f32))
    b2p = jnp.zeros((H_PAD, 1), f32).at[:H, 0].set(b2.astype(f32))
    w3p = jnp.zeros((H_PAD, H_PAD), f32).at[:H, :H].set(w3.astype(f32))
    b3p = jnp.zeros((H_PAD, 1), f32).at[:H, 0].set(b3.astype(f32))
    w4p = jnp.zeros((OUT_PAD, H_PAD), f32).at[:out_dim, :H].set(w4.astype(f32))
    b4p = jnp.zeros((OUT_PAD, 1), f32).at[:out_dim, 0].set(b4.astype(f32))

    # Every grid step sees the full (small) parameter block.
    def rep(shape):
        return pl.BlockSpec(shape, lambda i: (0,) * len(shape))

    param_elems = (w1p.size + b1p.size + w2p.size + b2p.size +
                   w3p.size + b3p.size + w4p.size + b4p.size)
    flops = 2 * B_pad * (IN_PAD * H_PAD + 2 * H_PAD * H_PAD + H_PAD * OUT_PAD)
    bytes_accessed = 4 * (x_t.size + OUT_PAD * B_pad + param_elems)

    out_t = pl.pallas_call(
        _mlp_kernel,
        out_shape=jax.ShapeDtypeStruct((OUT_PAD, B_pad), f32),
        grid_spec=pltpu.PrefetchScalarGridSpec(
            num_scalar_prefetch=0,
            grid=grid,
            in_specs=[
                pl.BlockSpec((IN_PAD, batch_tile), lambda i: (0, i)),  # x tile
                rep(w1p.shape), rep(b1p.shape),
                rep(w2p.shape), rep(b2p.shape),
                rep(w3p.shape), rep(b3p.shape),
                rep(w4p.shape), rep(b4p.shape),
            ],
            out_specs=pl.BlockSpec((OUT_PAD, batch_tile), lambda i: (0, i)),
        ),
        compiler_params=pltpu.CompilerParams(
            dimension_semantics=("parallel",),        # pipeline + v7x megacore
            vmem_limit_bytes=32 * 1024 * 1024,        # safe on v5e/v6e/v7x
        ),
        cost_estimate=pl.CostEstimate(
            flops=int(flops), transcendentals=0,
            bytes_accessed=int(bytes_accessed)),
    )(x_t, w1p, b1p, w2p, b2p, w3p, b3p, w4p, b4p)

    # strip padding, back to [B, out_dim]
    return out_t[:out_dim, :B].T


def init_params(key, n_hidden=100, in_dim=2, out_dim=2, dtype=jnp.float32):
    """Deterministic PyTorch-style init; weights [out, in], biases [out]."""
    dims = [(in_dim, n_hidden), (n_hidden, n_hidden),
            (n_hidden, n_hidden), (n_hidden, out_dim)]
    params = {}
    for idx, (fan_in, fan_out) in enumerate(dims, start=1):
        key, kw, kb = jax.random.split(key, 3)
        bound = 1.0 / jnp.sqrt(float(fan_in))
        params[f"w{idx}"] = jax.random.uniform(
            kw, (fan_out, fan_in), dtype, minval=-bound, maxval=bound)
        params[f"b{idx}"] = jax.random.uniform(
            kb, (fan_out,), dtype, minval=-bound, maxval=bound)
    return params


def mlp_reference(x, params):
    """Plain-JAX reference of the same forward pass (PyTorch x @ W.T + b)."""
    h = jnp.maximum(x @ params["w1"].T + params["b1"], 0.0)
    h = jnp.maximum(h @ params["w2"].T + params["b2"], 0.0)
    h = jnp.maximum(h @ params["w3"].T + params["b3"], 0.0)
    return h @ params["w4"].T + params["b4"]


if __name__ == "__main__":
    key = jax.random.PRNGKey(0)
    k_params, k_x = jax.random.split(key)

    n_hidden = 100   # module default; padded to 128 inside the wrapper
    batch = 512      # -> batch_tile=256, grid=(2,): pipelined + megacore-ready
    params = init_params(k_params, n_hidden=n_hidden)
    x = jax.random.normal(k_x, (batch, 2), dtype=jnp.float32)  # state = [x, t]

    out = mlp_forward(x, params)
    out = jax.block_until_ready(out)

    ref = mlp_reference(x, params)
    assert out.shape == (batch, 2), out.shape
    max_err = jnp.max(jnp.abs(out - ref))
    assert jnp.allclose(out, ref, atol=1e-4, rtol=1e-4), f"max err {max_err}"

    print("KERNEL_OK")
</pallas_src>

<mosaic_0001>
module attributes {stable_mosaic.version = 11 : i64} {
  func.func @_mlp_kernel(%arg0: i32, %arg1: memref<8x256xf32, #tpu.memory_space<vmem>>, %arg2: memref<128x8xf32, #tpu.memory_space<vmem>>, %arg3: memref<128x1xf32, #tpu.memory_space<vmem>>, %arg4: memref<128x128xf32, #tpu.memory_space<vmem>>, %arg5: memref<128x1xf32, #tpu.memory_space<vmem>>, %arg6: memref<128x128xf32, #tpu.memory_space<vmem>>, %arg7: memref<128x1xf32, #tpu.memory_space<vmem>>, %arg8: memref<8x128xf32, #tpu.memory_space<vmem>>, %arg9: memref<8x1xf32, #tpu.memory_space<vmem>>, %arg10: memref<8x256xf32, #tpu.memory_space<vmem>>) attributes {dimension_semantics = [#tpu.dimension_semantics<parallel>], iteration_bounds = array<i64: 2>, scalar_prefetch = 0 : i64, scratch_operands = 0 : i64, tpu.core_type = #tpu.core_type<tc>, window_params = [{transform_indices = @transform_0, window_bounds = array<i64: 8, 256>}, {pipeline_mode = #tpu.pipeline_mode<synchronous>, transform_indices = @transform_1, window_bounds = array<i64: 128, 8>}, {pipeline_mode = #tpu.pipeline_mode<synchronous>, transform_indices = @transform_2, window_bounds = array<i64: 128, 1>}, {pipeline_mode = #tpu.pipeline_mode<synchronous>, transform_indices = @transform_3, window_bounds = array<i64: 128, 128>}, {pipeline_mode = #tpu.pipeline_mode<synchronous>, transform_indices = @transform_4, window_bounds = array<i64: 128, 1>}, {pipeline_mode = #tpu.pipeline_mode<synchronous>, transform_indices = @transform_5, window_bounds = array<i64: 128, 128>}, {pipeline_mode = #tpu.pipeline_mode<synchronous>, transform_indices = @transform_6, window_bounds = array<i64: 128, 1>}, {pipeline_mode = #tpu.pipeline_mode<synchronous>, transform_indices = @transform_7, window_bounds = array<i64: 8, 128>}, {pipeline_mode = #tpu.pipeline_mode<synchronous>, transform_indices = @transform_8, window_bounds = array<i64: 8, 1>}, {transform_indices = @transform_9, window_bounds = array<i64: 8, 256>}]} {
    %c0 = arith.constant 0 : index
    %c0_0 = arith.constant 0 : index
    %0 = vector.load %arg1[%c0, %c0_0] : memref<8x256xf32, #tpu.memory_space<vmem>>, vector<8x256xf32>
    %c0_1 = arith.constant 0 : index
    %c0_2 = arith.constant 0 : index
    %1 = vector.load %arg2[%c0_1, %c0_2] : memref<128x8xf32, #tpu.memory_space<vmem>>, vector<128x8xf32>
    %cst = arith.constant dense<0.000000e+00> : vector<128x256xf32>
    %2 = tpu.matmul %1, %0, %cst {dimension_numbers = #tpu.dot_dimension_numbers<[1], [0], [0], [1], [0, 0, 1, 1], [], []>} : vector<128x8xf32>, vector<8x256xf32>, vector<128x256xf32> -> vector<128x256xf32>
    %c0_3 = arith.constant 0 : index
    %c0_4 = arith.constant 0 : index
    %3 = vector.load %arg3[%c0_3, %c0_4] : memref<128x1xf32, #tpu.memory_space<vmem>>, vector<128x1xf32>
    %4 = vector.broadcast %3 : vector<128x1xf32> to vector<128x256xf32>
    %5 = arith.addf %2, %4 : vector<128x256xf32>
    %cst_5 = arith.constant 0.000000e+00 : f32
    %6 = vector.broadcast %cst_5 : f32 to vector<128x256xf32>
    %7 = arith.maximumf %5, %6 : vector<128x256xf32>
    %c0_6 = arith.constant 0 : index
    %c0_7 = arith.constant 0 : index
    %8 = vector.load %arg4[%c0_6, %c0_7] : memref<128x128xf32, #tpu.memory_space<vmem>>, vector<128x128xf32>
    %cst_8 = arith.constant dense<0.000000e+00> : vector<128x256xf32>
    %9 = tpu.matmul %8, %7, %cst_8 {dimension_numbers = #tpu.dot_dimension_numbers<[1], [0], [0], [1], [0, 0, 1, 1], [], []>} : vector<128x128xf32>, vector<128x256xf32>, vector<128x256xf32> -> vector<128x256xf32>
    %c0_9 = arith.constant 0 : index
    %c0_10 = arith.constant 0 : index
    %10 = vector.load %arg5[%c0_9, %c0_10] : memref<128x1xf32, #tpu.memory_space<vmem>>, vector<128x1xf32>
    %11 = vector.broadcast %10 : vector<128x1xf32> to vector<128x256xf32>
    %12 = arith.addf %9, %11 : vector<128x256xf32>
    %cst_11 = arith.constant 0.000000e+00 : f32
    %13 = vector.broadcast %cst_11 : f32 to vector<128x256xf32>
    %14 = arith.maximumf %12, %13 : vector<128x256xf32>
    %c0_12 = arith.constant 0 : index
    %c0_13 = arith.constant 0 : index
    %15 = vector.load %arg6[%c0_12, %c0_13] : memref<128x128xf32, #tpu.memory_space<vmem>>, vector<128x128xf32>
    %cst_14 = arith.constant dense<0.000000e+00> : vector<128x256xf32>
    %16 = tpu.matmul %15, %14, %cst_14 {dimension_numbers = #tpu.dot_dimension_numbers<[1], [0], [0], [1], [0, 0, 1, 1], [], []>} : vector<128x128xf32>, vector<128x256xf32>, vector<128x256xf32> -> vector<128x256xf32>
    %c0_15 = arith.constant 0 : index
    %c0_16 = arith.constant 0 : index
    %17 = vector.load %arg7[%c0_15, %c0_16] : memref<128x1xf32, #tpu.memory_space<vmem>>, vector<128x1xf32>
    %18 = vector.broadcast %17 : vector<128x1xf32> to vector<128x256xf32>
    %19 = arith.addf %16, %18 : vector<128x256xf32>
    %cst_17 = arith.constant 0.000000e+00 : f32
    %20 = vector.broadcast %cst_17 : f32 to vector<128x256xf32>
    %21 = arith.maximumf %19, %20 : vector<128x256xf32>
    %c0_18 = arith.constant 0 : index
    %c0_19 = arith.constant 0 : index
    %22 = vector.load %arg8[%c0_18, %c0_19] : memref<8x128xf32, #tpu.memory_space<vmem>>, vector<8x128xf32>
    %cst_20 = arith.constant dense<0.000000e+00> : vector<8x256xf32>
    %23 = tpu.matmul %22, %21, %cst_20 {dimension_numbers = #tpu.dot_dimension_numbers<[1], [0], [0], [1], [0, 0, 1, 1], [], []>} : vector<8x128xf32>, vector<128x256xf32>, vector<8x256xf32> -> vector<8x256xf32>
    %c0_21 = arith.constant 0 : index
    %c0_22 = arith.constant 0 : index
    %24 = vector.load %arg9[%c0_21, %c0_22] : memref<8x1xf32, #tpu.memory_space<vmem>>, vector<8x1xf32>
    %25 = vector.broadcast %24 : vector<8x1xf32> to vector<8x256xf32>
    %26 = arith.addf %23, %25 : vector<8x256xf32>
    %c0_23 = arith.constant 0 : index
    %c0_24 = arith.constant 0 : index
    %27 = vector.load %arg10[%c0_23, %c0_24] : memref<8x256xf32, #tpu.memory_space<vmem>>, vector<8x256xf32>
    tpu.vector_store %arg10[%c0_23, %c0_24], %26 {strides = array<i32>} : memref<8x256xf32, #tpu.memory_space<vmem>>, vector<8x256xf32>,
    return
  }
  func.func @transform_0(%arg0: i32) -> (i32, i32) {
    %c0_i32 = arith.constant 0 : i32
    %c0_i32_0 = arith.constant 0 : i32
    return %c0_i32, %arg0 : i32, i32
  }
  func.func @transform_1(%arg0: i32) -> (i32, i32) {
    %c0_i32 = arith.constant 0 : i32
    %c0_i32_0 = arith.constant 0 : i32
    %c0_i32_1 = arith.constant 0 : i32
    return %c0_i32, %c0_i32_0 : i32, i32
  }
  func.func @transform_2(%arg0: i32) -> (i32, i32) {
    %c0_i32 = arith.constant 0 : i32
    %c0_i32_0 = arith.constant 0 : i32
    %c0_i32_1 = arith.constant 0 : i32
    return %c0_i32, %c0_i32_0 : i32, i32
  }
  func.func @transform_3(%arg0: i32) -> (i32, i32) {
    %c0_i32 = arith.constant 0 : i32
    %c0_i32_0 = arith.constant 0 : i32
    %c0_i32_1 = arith.constant 0 : i32
    return %c0_i32, %c0_i32_0 : i32, i32
  }
  func.func @transform_4(%arg0: i32) -> (i32, i32) {
    %c0_i32 = arith.constant 0 : i32
    %c0_i32_0 = arith.constant 0 : i32
    %c0_i32_1 = arith.constant 0 : i32
    return %c0_i32, %c0_i32_0 : i32, i32
  }
  func.func @transform_5(%arg0: i32) -> (i32, i32) {
    %c0_i32 = arith.constant 0 : i32
    %c0_i32_0 = arith.constant 0 : i32
    %c0_i32_1 = arith.constant 0 : i32
    return %c0_i32, %c0_i32_0 : i32, i32
  }
  func.func @transform_6(%arg0: i32) -> (i32, i32) {
    %c0_i32 = arith.constant 0 : i32
    %c0_i32_0 = arith.constant 0 : i32
    %c0_i32_1 = arith.constant 0 : i32
    return %c0_i32, %c0_i32_0 : i32, i32
  }
  func.func @transform_7(%arg0: i32) -> (i32, i32) {
    %c0_i32 = arith.constant 0 : i32
    %c0_i32_0 = arith.constant 0 : i32
    %c0_i32_1 = arith.constant 0 : i32
    return %c0_i32, %c0_i32_0 : i32, i32
  }
  func.func @transform_8(%arg0: i32) -> (i32, i32) {
    %c0_i32 = arith.constant 0 : i32
    %c0_i32_0 = arith.constant 0 : i32
    %c0_i32_1 = arith.constant 0 : i32
    return %c0_i32, %c0_i32_0 : i32, i32
  }
  func.func @transform_9(%arg0: i32) -> (i32, i32) {
    %c0_i32 = arith.constant 0 : i32
    %c0_i32_0 = arith.constant 0 : i32
    return %c0_i32, %arg0 : i32, i32
  }
}

</mosaic_0001>

<llo_original>
// kernel: tpu_custom_call.1
$region0: #{tpu_custom_call.1}
  #allocation0 [shape = 'u32[]', space=smem, size = 0x4, offset = 0x4, fixed_abs, tag = 'smem constant byte address 0x4 - core index']
  #allocation1 [shape = 'u32[144,128]{1,0:T(1,128)}', space=vmem, size = 0x12000, scoped, tag = 'internal scratch']
  %s0 = inlined_call_operand.vmem [shape: f32[8,512], index: 0, kind: input, shape index: {}]
  %s1 = inlined_call_operand.vmem [shape: f32[128,8], index: 1, kind: input, shape index: {}]
  %s2 = inlined_call_operand.vmem [shape: f32[128,1], index: 2, kind: input, shape index: {}]
  %s3 = inlined_call_operand.vmem [shape: f32[128,128], index: 3, kind: input, shape index: {}]
  %s4 = inlined_call_operand.vmem [shape: f32[128,1], index: 4, kind: input, shape index: {}]
  %s5 = inlined_call_operand.vmem [shape: f32[128,128], index: 5, kind: input, shape index: {}]
  %s6 = inlined_call_operand.vmem [shape: f32[128,1], index: 6, kind: input, shape index: {}]
  %s7 = inlined_call_operand.vmem [shape: f32[8,128], index: 7, kind: input, shape index: {}]
  %s8 = inlined_call_operand.vmem [shape: f32[8,1], index: 8, kind: input, shape index: {}]
  %s9 = inlined_call_operand.hbm [shape: f32[8,512], index: 9, kind: output, shape index: {}]
  %s10 = sld [smem:[#allocation0]]
  $region69: #{tpu_custom_call.1} parent=0
    _
  %s12 = ssub.s32 1, %s10
  %s13 = scalar_select 0, %s12, %s10
  $region1: #{tpu_custom_call.1} parent=0
    #allocation2 [shape = 'u8[16384]{0}', space=vmem, size = 0x4000, scoped, tag = 'output window, operand 0']
    #allocation3 [shape = 's32[2]{0}', space=sflag, size = 0x8, scoped, tag = 'scoped memory for tpu_custom_call.1']
    %14 = vsyncpa [#allocation3], 0
    %s15 = scalar_lea.sflag [#allocation3], 1
    %16 = vsyncpa %s15, 0
    loop: start=0, step=1, limit=4
    $region2: #{tpu_custom_call.1} parent=1 // loop_pre_header
      _
    $region3: #{tpu_custom_call.1} parent=1 // loop_header
      %s18 = sphi 0, %s22
      %p19 = scmp.ge.s32.totalorder %s18, 4
      %s28 = sphi 0, %s30
      %s31 = sphi 0, %s28
      %s32 = sphi 0, %s31
      %s48 = sphi 0, %s32
      %s52 = sphi 0, %s52
      %s54 = sphi 0, %s52
      %s55 = sphi 0, %s54
      %s69 = sphi 0, %s55
      %s73 = sphi 0, %s73
      %s75 = sphi 0, %s73
      %s76 = sphi 0, %s75
      %s90 = sphi 0, %s76
      %s94 = sphi 0, %s94
      %s96 = sphi 0, %s94
      %s97 = sphi 0, %s96
      %s111 = sphi 0, %s97
      %s115 = sphi 0, %s115
      %s117 = sphi 0, %s115
      %s118 = sphi 0, %s117
      %s132 = sphi 0, %s118
      %s136 = sphi 0, %s136
      %s138 = sphi 0, %s136
      %s139 = sphi 0, %s138
      %s153 = sphi 0, %s139
      %s157 = sphi 0, %s157
      %s159 = sphi 0, %s157
      %s160 = sphi 0, %s159
      %s174 = sphi 0, %s160
      %s178 = sphi 0, %s178
      %s180 = sphi 0, %s178
      %s181 = sphi 0, %s180
      %s195 = sphi 0, %s181
      %s199 = sphi 0, %s199
      %s201 = sphi 0, %s199
      %s202 = sphi 0, %s201
      %s216 = sphi 0, %s202
      %s222 = sphi 0, %s224
      %s225 = sphi 0, %s222
      %s226 = sphi 0, %s225
      %s242 = sphi 0, %s226
    $region4: #{tpu_custom_call.1} parent=1 // loop_header_branch
      %21 = sbr.rel (%p19) target = $region8
    $region5: #{tpu_custom_call.1} parent=1 // loop_body
      %s23 = ssub.s32 %s18, 1
      %s24 = ssub.s32 %s18, 2
      %s25 = sadd.s32 %s18, 1
      %s26 = ssub.s32 %s18, %s25
      %p27 = scmp.eq.s32.totalorder %s26, 0
      %s29 = sadd.s32 %s28, 1
      %s30 = scalar_select %p27, %s28, %s29
      %p33 = pneg %p27
      %p34 = scmp.eq.s32.totalorder %s18, 1
      %p35 = por %p33, %p34
      %p36 = scmp.ne.s32.totalorder %s28, %s31
      %p37 = scmp.eq.s32.totalorder %s18, 0
      %p38 = por %p36, %p37
      %p39 = scmp.ne.s32.totalorder %s28, %s31
      %p40 = scmp.eq.s32.totalorder %s23, 1
      %p41 = por %p39, %p40
      %p42 = scmp.ne.s32.totalorder %s31, %s32
      %p43 = scmp.eq.s32.totalorder %s23, 0
      %p44 = por %p42, %p43
      %p45 = scmp.ne.s32.totalorder %s31, %s32
      %p46 = scmp.eq.s32.totalorder %s24, 1
      %p47 = por %p45, %p46
      %p49 = scmp.ne.s32.totalorder %s32, %s48
      %p50 = scmp.eq.s32.totalorder %s24, 0
      %p51 = por %p49, %p50
      %s53 = sadd.s32 %s52, 1
      %p56 = scmp.eq.s32.totalorder %s18, 1
      %p57 = scmp.ne.s32.totalorder %s52, %s54
      %p58 = scmp.eq.s32.totalorder %s18, 0
      %p59 = por %p57, %p58
      %p60 = scmp.ne.s32.totalorder %s52, %s54
      %p61 = scmp.eq.s32.totalorder %s23, 1
      %p62 = por %p60, %p61
      %p63 = scmp.ne.s32.totalorder %s54, %s55
      %p64 = scmp.eq.s32.totalorder %s23, 0
      %p65 = por %p63, %p64
      %p66 = scmp.ne.s32.totalorder %s54, %s55
      %p67 = scmp.eq.s32.totalorder %s24, 1
      %p68 = por %p66, %p67
      %p70 = scmp.ne.s32.totalorder %s55, %s69
      %p71 = scmp.eq.s32.totalorder %s24, 0
      %p72 = por %p70, %p71
      %s74 = sadd.s32 %s73, 1
      %p77 = scmp.eq.s32.totalorder %s18, 1
      %p78 = scmp.ne.s32.totalorder %s73, %s75
      %p79 = scmp.eq.s32.totalorder %s18, 0
      %p80 = por %p78, %p79
      %p81 = scmp.ne.s32.totalorder %s73, %s75
      %p82 = scmp.eq.s32.totalorder %s23, 1
      %p83 = por %p81, %p82
      %p84 = scmp.ne.s32.totalorder %s75, %s76
      %p85 = scmp.eq.s32.totalorder %s23, 0
      %p86 = por %p84, %p85
      %p87 = scmp.ne.s32.totalorder %s75, %s76
      %p88 = scmp.eq.s32.totalorder %s24, 1
      %p89 = por %p87, %p88
      %p91 = scmp.ne.s32.totalorder %s76, %s90
      %p92 = scmp.eq.s32.totalorder %s24, 0
      %p93 = por %p91, %p92
      %s95 = sadd.s32 %s94, 1
      %p98 = scmp.eq.s32.totalorder %s18, 1
      %p99 = scmp.ne.s32.totalorder %s94, %s96
      %p100 = scmp.eq.s32.totalorder %s18, 0
      %p101 = por %p99, %p100
      %p102 = scmp.ne.s32.totalorder %s94, %s96
      %p103 = scmp.eq.s32.totalorder %s23, 1
      %p104 = por %p102, %p103
      %p105 = scmp.ne.s32.totalorder %s96, %s97
      %p106 = scmp.eq.s32.totalorder %s23, 0
      %p107 = por %p105, %p106
      %p108 = scmp.ne.s32.totalorder %s96, %s97
      %p109 = scmp.eq.s32.totalorder %s24, 1
      %p110 = por %p108, %p109
      %p112 = scmp.ne.s32.totalorder %s97, %s111
      %p113 = scmp.eq.s32.totalorder %s24, 0
      %p114 = por %p112, %p113
      %s116 = sadd.s32 %s115, 1
      %p119 = scmp.eq.s32.totalorder %s18, 1
      %p120 = scmp.ne.s32.totalorder %s115, %s117
      %p121 = scmp.eq.s32.totalorder %s18, 0
      %p122 = por %p120, %p121
      %p123 = scmp.ne.s32.totalorder %s115, %s117
      %p124 = scmp.eq.s32.totalorder %s23, 1
      %p125 = por %p123, %p124
      %p126 = scmp.ne.s32.totalorder %s117, %s118
      %p127 = scmp.eq.s32.totalorder %s23, 0
      %p128 = por %p126, %p127
      %p129 = scmp.ne.s32.totalorder %s117, %s118
      %p130 = scmp.eq.s32.totalorder %s24, 1
      %p131 = por %p129, %p130
      %p133 = scmp.ne.s32.totalorder %s118, %s132
      %p134 = scmp.eq.s32.totalorder %s24, 0
      %p135 = por %p133, %p134
      %s137 = sadd.s32 %s136, 1
      %p140 = scmp.eq.s32.totalorder %s18, 1
      %p141 = scmp.ne.s32.totalorder %s136, %s138
      %p142 = scmp.eq.s32.totalorder %s18, 0
      %p143 = por %p141, %p142
      %p144 = scmp.ne.s32.totalorder %s136, %s138
      %p145 = scmp.eq.s32.totalorder %s23, 1
      %p146 = por %p144, %p145
      %p147 = scmp.ne.s32.totalorder %s138, %s139
      %p148 = scmp.eq.s32.totalorder %s23, 0
      %p149 = por %p147, %p148
      %p150 = scmp.ne.s32.totalorder %s138, %s139
      %p151 = scmp.eq.s32.totalorder %s24, 1
      %p152 = por %p150, %p151
      %p154 = scmp.ne.s32.totalorder %s139, %s153
      %p155 = scmp.eq.s32.totalorder %s24, 0
      %p156 = por %p154, %p155
      %s158 = sadd.s32 %s157, 1
      %p161 = scmp.eq.s32.totalorder %s18, 1
      %p162 = scmp.ne.s32.totalorder %s157, %s159
      %p163 = scmp.eq.s32.totalorder %s18, 0
      %p164 = por %p162, %p163
      %p165 = scmp.ne.s32.totalorder %s157, %s159
      %p166 = scmp.eq.s32.totalorder %s23, 1
      %p167 = por %p165, %p166
      %p168 = scmp.ne.s32.totalorder %s159, %s160
      %p169 = scmp.eq.s32.totalorder %s23, 0
      %p170 = por %p168, %p169
      %p171 = scmp.ne.s32.totalorder %s159, %s160
      %p172 = scmp.eq.s32.totalorder %s24, 1
      %p173 = por %p171, %p172
      %p175 = scmp.ne.s32.totalorder %s160, %s174
      %p176 = scmp.eq.s32.totalorder %s24, 0
      %p177 = por %p175, %p176
      %s179 = sadd.s32 %s178, 1
      %p182 = scmp.eq.s32.totalorder %s18, 1
      %p183 = scmp.ne.s32.totalorder %s178, %s180
      %p184 = scmp.eq.s32.totalorder %s18, 0
      %p185 = por %p183, %p184
      %p186 = scmp.ne.s32.totalorder %s178, %s180
      %p187 = scmp.eq.s32.totalorder %s23, 1
      %p188 = por %p186, %p187
      %p189 = scmp.ne.s32.totalorder %s180, %s181
      %p190 = scmp.eq.s32.totalorder %s23, 0
      %p191 = por %p189, %p190
      %p192 = scmp.ne.s32.totalorder %s180, %s181
      %p193 = scmp.eq.s32.totalorder %s24, 1
      %p194 = por %p192, %p193
      %p196 = scmp.ne.s32.totalorder %s181, %s195
      %p197 = scmp.eq.s32.totalorder %s24, 0
      %p198 = por %p196, %p197
      %s200 = sadd.s32 %s199, 1
      %p203 = scmp.eq.s32.totalorder %s18, 1
      %p204 = scmp.ne.s32.totalorder %s199, %s201
      %p205 = scmp.eq.s32.totalorder %s18, 0
      %p206 = por %p204, %p205
      %p207 = scmp.ne.s32.totalorder %s199, %s201
      %p208 = scmp.eq.s32.totalorder %s23, 1
      %p209 = por %p207, %p208
      %p210 = scmp.ne.s32.totalorder %s201, %s202
      %p211 = scmp.eq.s32.totalorder %s23, 0
      %p212 = por %p210, %p211
      %p213 = scmp.ne.s32.totalorder %s201, %s202
      %p214 = scmp.eq.s32.totalorder %s24, 1
      %p215 = por %p213, %p214
      %p217 = scmp.ne.s32.totalorder %s202, %s216
      %p218 = scmp.eq.s32.totalorder %s24, 0
      %p219 = por %p217, %p218
      %s220 = ssub.s32 %s18, %s25
      %p221 = scmp.eq.s32.totalorder %s220, 0
      %s223 = sadd.s32 %s222, 1
      %s224 = scalar_select %p221, %s222, %s223
      %p227 = pneg %p221
      %p228 = scmp.eq.s32.totalorder %s18, 1
      %p229 = por %p227, %p228
      %p230 = scmp.ne.s32.totalorder %s222, %s225
      %p231 = scmp.eq.s32.totalorder %s18, 0
      %p232 = por %p230, %p231
      %p233 = scmp.ne.s32.totalorder %s222, %s225
      %p234 = scmp.eq.s32.totalorder %s23, 1
      %p235 = por %p233, %p234
      %p236 = scmp.ne.s32.totalorder %s225, %s226
      %p237 = scmp.eq.s32.totalorder %s23, 0
      %p238 = por %p236, %p237
      %p239 = scmp.ne.s32.totalorder %s225, %s226
      %p240 = scmp.eq.s32.totalorder %s24, 1
      %p241 = por %p239, %p240
      %p243 = scmp.ne.s32.totalorder %s226, %s242
      %p244 = scmp.eq.s32.totalorder %s24, 0
      %p245 = por %p243, %p244
      %p246 = scmp.le.s32.totalorder 1, %s18
      %p247 = scmp.lt.s32.totalorder %s18, 3
      %p248 = pnand %p246, %p247
      %p249 = pneg %p248
      // Predicated region
      $region9: #{tpu_custom_call.1} parent=5 // pred_check
        _
      $region10: #{tpu_custom_call.1} parent=5 // pred_check_branch
        %251 = sbr.rel (%p248) target = $region12
      $region11: #{tpu_custom_call.1} parent=5 // pred_region
        %s252 = ssub.s32 %s18, 1
        // Predicated region
        $region13: #{tpu_custom_call.1} parent=11 // pred_check
          %p253 = pneg %p65
        $region14: #{tpu_custom_call.1} parent=11 // pred_check_branch
          %255 = sbr.rel (%p253) target = $region16
        $region15: #{tpu_custom_call.1} parent=11 // pred_region
          _
        $region16: #{tpu_custom_call.1} parent=11 // pred_fallthru
          _
        // Predicated region
        $region17: #{tpu_custom_call.1} parent=11 // pred_check
          %p256 = pneg %p86
        $region18: #{tpu_custom_call.1} parent=11 // pred_check_branch
          %258 = sbr.rel (%p256) target = $region20
        $region19: #{tpu_custom_call.1} parent=11 // pred_region
          _
        $region20: #{tpu_custom_call.1} parent=11 // pred_fallthru
          _
        // Predicated region
        $region21: #{tpu_custom_call.1} parent=11 // pred_check
          %p259 = pneg %p107
        $region22: #{tpu_custom_call.1} parent=11 // pred_check_branch
          %261 = sbr.rel (%p259) target = $region24
        $region23: #{tpu_custom_call.1} parent=11 // pred_region
          _
        $region24: #{tpu_custom_call.1} parent=11 // pred_fallthru
          _
        // Predicated region
        $region25: #{tpu_custom_call.1} parent=11 // pred_check
          %p262 = pneg %p128
        $region26: #{tpu_custom_call.1} parent=11 // pred_check_branch
          %264 = sbr.rel (%p262) target = $region28
        $region27: #{tpu_custom_call.1} parent=11 // pred_region
          _
        $region28: #{tpu_custom_call.1} parent=11 // pred_fallthru
          _
        // Predicated region
        $region29: #{tpu_custom_call.1} parent=11 // pred_check
          %p265 = pneg %p149
        $region30: #{tpu_custom_call.1} parent=11 // pred_check_branch
          %267 = sbr.rel (%p265) target = $region32
        $region31: #{tpu_custom_call.1} parent=11 // pred_region
          _
        $region32: #{tpu_custom_call.1} parent=11 // pred_fallthru
          _
        // Predicated region
        $region33: #{tpu_custom_call.1} parent=11 // pred_check
          %p268 = pneg %p170
        $region34: #{tpu_custom_call.1} parent=11 // pred_check_branch
          %270 = sbr.rel (%p268) target = $region36
        $region35: #{tpu_custom_call.1} parent=11 // pred_region
          _
        $region36: #{tpu_custom_call.1} parent=11 // pred_fallthru
          _
        // Predicated region
        $region37: #{tpu_custom_call.1} parent=11 // pred_check
          %p271 = pneg %p191
        $region38: #{tpu_custom_call.1} parent=11 // pred_check_branch
          %273 = sbr.rel (%p271) target = $region40
        $region39: #{tpu_custom_call.1} parent=11 // pred_region
          _
        $region40: #{tpu_custom_call.1} parent=11 // pred_fallthru
          _
        // Predicated region
        $region41: #{tpu_custom_call.1} parent=11 // pred_check
          %p274 = pneg %p212
        $region42: #{tpu_custom_call.1} parent=11 // pred_check_branch
          %276 = sbr.rel (%p274) target = $region44
        $region43: #{tpu_custom_call.1} parent=11 // pred_region
          _
        $region44: #{tpu_custom_call.1} parent=11 // pred_fallthru
          _
      $region12: #{tpu_custom_call.1} parent=5 // pred_fallthru
        _
      %p277 = scmp.lt.s32.totalorder %s18, 2
      // Predicated region
      $region45: #{tpu_custom_call.1} parent=5 // pred_check
        %p278 = pneg %p277
      $region46: #{tpu_custom_call.1} parent=5 // pred_check_branch
        %280 = sbr.rel (%p278) target = $region48
      $region47: #{tpu_custom_call.1} parent=5 // pred_region
        // Predicated region
        $region49: #{tpu_custom_call.1} parent=47 // pred_check
          %p281 = pneg %p38
        $region50: #{tpu_custom_call.1} parent=47 // pred_check_branch
          %283 = sbr.rel (%p281) target = $region52
        $region51: #{tpu_custom_call.1} parent=47 // pred_region
          %s284 = smul.u32 2, %s18
          %p285 = scmp.lt.s32.totalorder %s284, 3
          %s286 = scalar_select %p285, %s284, 3
          %s287 = smul.addr %s286, 8
          %s288 = scalar_lea.vmem %s0, %s287
          %s289 = smul.u32 2, %s18
        $region52: #{tpu_custom_call.1} parent=47 // pred_fallthru
          _
      $region48: #{tpu_custom_call.1} parent=5 // pred_fallthru
        _
      %p290 = scmp.le.s32.totalorder 1, %s18
      %p291 = scmp.lt.s32.totalorder %s18, 3
      %p292 = pnand %p290, %p291
      %p293 = pneg %p292
      // Predicated region
      $region53: #{tpu_custom_call.1} parent=5 // pred_check
        _
      $region54: #{tpu_custom_call.1} parent=5 // pred_check_branch
        %295 = sbr.rel (%p292) target = $region56
      $region55: #{tpu_custom_call.1} parent=5 // pred_region
        %s296 = ssub.s32 %s18, 1
        %s297 = smul.u32 2, %s23
        %p298 = scmp.lt.s32.totalorder %s297, 3
        %s299 = scalar_select %p298, %s297, 3
        %s300 = smul.addr %s299, 8
        %s301 = scalar_lea.vmem %s0, %s300
        %p302 = pneg %p44
        %p303 = pneg %p41
        %p304 = pneg %p65
        %p305 = pneg %p62
        %p306 = pneg %p86
        %p307 = pneg %p83
        %p308 = pneg %p107
        %p309 = pneg %p104
        %p310 = pneg %p128
        %p311 = pneg %p125
        %p312 = pneg %p149
        %p313 = pneg %p146
        %p314 = pneg %p170
        %p315 = pneg %p167
        %p316 = pneg %p191
        %p317 = pneg %p188
        %p318 = pneg %p212
        %p319 = pneg %p209
        %p320 = pneg %p238
        %p321 = pneg %p235
        %s322 = sand.u32 %s225, 1
        %s323 = scalar_lea.sflag [#allocation3], %s322
        %s324 = sand.u32 %s225, 1
        %s325 = smul.addr %s324, 16
        %s326 = scalar_lea.vmem [#allocation2], %s325
        %s327 = smul.u32 2, %s23
        %p328 = scmp.lt.s32.totalorder %s327, 3
        %s329 = scalar_select %p328, %s327, 3
        %s330 = smul.addr %s329, 8
        %s331 = scalar_lea.vmem %s0, %s330
        %s332 = smul.u32 2, %s23
        %s333 = smul.u32 2, %s23
        %v334 = vld [vmem:[%s331] sm:$0xff]
        %v335 = vld [vmem:[%s331 + $0x8] sm:$0xff]
        %v336 = vld [vmem:[%s1] sm:$0xff]
        %v337 = vld [vmem:[%s1 + $0x8] sm:$0xff]
        %v338 = vld [vmem:[%s1 + $0x10] sm:$0xff]
        %v339 = vld [vmem:[%s1 + $0x18] sm:$0xff]
        %v340 = vld [vmem:[%s1 + $0x20] sm:$0xff]
        %v341 = vld [vmem:[%s1 + $0x28] sm:$0xff]
        %v342 = vld [vmem:[%s1 + $0x30] sm:$0xff]
        %v343 = vld [vmem:[%s1 + $0x38] sm:$0xff]
        %v344 = vld [vmem:[%s1 + $0x40] sm:$0xff]
        %v345 = vld [vmem:[%s1 + $0x48] sm:$0xff]
        %v346 = vld [vmem:[%s1 + $0x50] sm:$0xff]
        %v347 = vld [vmem:[%s1 + $0x58] sm:$0xff]
        %v348 = vld [vmem:[%s1 + $0x60] sm:$0xff]
        %v349 = vld [vmem:[%s1 + $0x68] sm:$0xff]
        %v350 = vld [vmem:[%s1 + $0x70] sm:$0xff]
        %v351 = vld [vmem:[%s1 + $0x78] sm:$0xff]
        %v352 = vld [vmem:[%s2] sm:$0xff]
        %v353 = vld [vmem:[%s2 + $0x8] sm:$0xff]
        %v354 = vld [vmem:[%s2 + $0x10] sm:$0xff]
        %v355 = vld [vmem:[%s2 + $0x18] sm:$0xff]
        %v356 = vld [vmem:[%s2 + $0x20] sm:$0xff]
        %v357 = vld [vmem:[%s2 + $0x28] sm:$0xff]
        %v358 = vld [vmem:[%s2 + $0x30] sm:$0xff]
        %v359 = vld [vmem:[%s2 + $0x38] sm:$0xff]
        %v360 = vld [vmem:[%s2 + $0x40] sm:$0xff]
        %v361 = vld [vmem:[%s2 + $0x48] sm:$0xff]
        %v362 = vld [vmem:[%s2 + $0x50] sm:$0xff]
        %v363 = vld [vmem:[%s2 + $0x58] sm:$0xff]
        %v364 = vld [vmem:[%s2 + $0x60] sm:$0xff]
        %v365 = vld [vmem:[%s2 + $0x68] sm:$0xff]
        %v366 = vld [vmem:[%s2 + $0x70] sm:$0xff]
        %v367 = vld [vmem:[%s2 + $0x78] sm:$0xff]
        %369 = vset.pattern.permute.xlu0 0
        %370 = vperm.xlu0 %369, %v352
        %v371 = vpop.permute.xlu0 %370
        %374 = vset.pattern.permute.xlu0 0
        %375 = vperm.xlu0 %374, %v353
        %v376 = vpop.permute.xlu0 %375
        %379 = vset.pattern.permute.xlu0 0
        %380 = vperm.xlu0 %379, %v354
        %v381 = vpop.permute.xlu0 %380
        %384 = vset.pattern.permute.xlu0 0
        %385 = vperm.xlu0 %384, %v355
        %v386 = vpop.permute.xlu0 %385
        %389 = vset.pattern.permute.xlu0 0
        %390 = vperm.xlu0 %389, %v356
        %v391 = vpop.permute.xlu0 %390
        %394 = vset.pattern.permute.xlu0 0
        %395 = vperm.xlu0 %394, %v357
        %v396 = vpop.permute.xlu0 %395
        %399 = vset.pattern.permute.xlu0 0
        %400 = vperm.xlu0 %399, %v358
        %v401 = vpop.permute.xlu0 %400
        %404 = vset.pattern.permute.xlu0 0
        %405 = vperm.xlu0 %404, %v359
        %v406 = vpop.permute.xlu0 %405
        %409 = vset.pattern.permute.xlu0 0
        %410 = vperm.xlu0 %409, %v360
        %v411 = vpop.permute.xlu0 %410
        %414 = vset.pattern.permute.xlu0 0
        %415 = vperm.xlu0 %414, %v361
        %v416 = vpop.permute.xlu0 %415
        %419 = vset.pattern.permute.xlu0 0
        %420 = vperm.xlu0 %419, %v362
        %v421 = vpop.permute.xlu0 %420
        %424 = vset.pattern.permute.xlu0 0
        %425 = vperm.xlu0 %424, %v363
        %v426 = vpop.permute.xlu0 %425
        %429 = vset.pattern.permute.xlu0 0
        %430 = vperm.xlu0 %429, %v364
        %v431 = vpop.permute.xlu0 %430
        %434 = vset.pattern.permute.xlu0 0
        %435 = vperm.xlu0 %434, %v365
        %v436 = vpop.permute.xlu0 %435
        %439 = vset.pattern.permute.xlu0 0
        %440 = vperm.xlu0 %439, %v366
        %v441 = vpop.permute.xlu0 %440
        %444 = vset.pattern.permute.xlu0 0
        %445 = vperm.xlu0 %444, %v367
        %v446 = vpop.permute.xlu0 %445
        %vm448 = vcmask 64512
        %v450 = vsel %vm448, %v336, 0
        %v453 = vsel %vm448, %v337, 0
        %v456 = vsel %vm448, %v338, 0
        %v459 = vsel %vm448, %v339, 0
        %v462 = vsel %vm448, %v340, 0
        %v465 = vsel %vm448, %v341, 0
        %v468 = vsel %vm448, %v342, 0
        %v471 = vsel %vm448, %v343, 0
        %v474 = vsel %vm448, %v344, 0
        %v477 = vsel %vm448, %v345, 0
        %v480 = vsel %vm448, %v346, 0
        %v483 = vsel %vm448, %v347, 0
        %v486 = vsel %vm448, %v348, 0
        %v489 = vsel %vm448, %v349, 0
        %v492 = vsel %vm448, %v350, 0
        %v495 = vsel %vm448, %v351, 0
        %497 = vmatprep.subr.mxu0 %v335
        %498 = vmatpush1.msra.mxu0 %v334
        %499 = vmatprep.subr.mxu0 0.0
        %500 = vmatpush1.msra.mxu0 0.0
        %501 = vmatprep.subr.mxu0 0.0
        %502 = vmatpush1.msra.mxu0 0.0
        %503 = vmatprep.subr.mxu0 0.0
        %504 = vmatpush1.msra.mxu0 0.0
        %505 = vmatprep.subr.mxu0 0.0
        %506 = vmatpush1.msra.mxu0 0.0
        %507 = vmatprep.subr.mxu0 0.0
        %508 = vmatpush1.msra.mxu0 0.0
        %509 = vmatprep.subr.mxu0 0.0
        %510 = vmatpush1.msra.mxu0 0.0
        %511 = vmatprep.subr.mxu0 0.0
        %512 = vmatpush1.msra.mxu0 0.0
        %513 = vmatprep.subr.mxu0 0.0
        %514 = vmatpush1.msra.mxu0 0.0
        %515 = vmatprep.subr.mxu0 0.0
        %516 = vmatpush1.msra.mxu0 0.0
        %517 = vmatprep.subr.mxu0 0.0
        %518 = vmatpush1.msra.mxu0 0.0
        %519 = vmatprep.subr.mxu0 0.0
        %520 = vmatpush1.msra.mxu0 0.0
        %521 = vmatprep.subr.mxu0 0.0
        %522 = vmatpush1.msra.mxu0 0.0
        %523 = vmatprep.subr.mxu0 0.0
        %524 = vmatpush1.msra.mxu0 0.0
        %525 = vmatprep.subr.mxu0 0.0
        %526 = vmatpush1.msra.mxu0 0.0
        %527 = vmatprep.subr.mxu0 0.0
        %528 = vmatpush1.msra.mxu0 0.0
        %529 = vmatprep.subr.mxu0 0.0
        %530 = vmatpush1.msra.mxu0 0.0
        %531 = vmatprep.subr.mxu0 0.0
        %532 = vmatpush1.msra.mxu0 0.0
        %533 = vmatprep.subr.mxu0 0.0
        %534 = vmatpush1.msra.mxu0 0.0
        %535 = vmatprep.subr.mxu0 0.0
        %536 = vmatpush1.msra.mxu0 0.0
        %537 = vmatprep.subr.mxu0 0.0
        %538 = vmatpush1.msra.mxu0 0.0
        %539 = vmatprep.subr.mxu0 0.0
        %540 = vmatpush1.msra.mxu0 0.0
        %541 = vmatprep.subr.mxu0 0.0
        %542 = vmatpush1.msra.mxu0 0.0
        %543 = vmatprep.subr.mxu0 0.0
        %544 = vmatpush1.msra.mxu0 0.0
        %545 = vmatprep.subr.mxu0 0.0
        %546 = vmatpush1.msra.mxu0 0.0
        %547 = vmatprep.subr.mxu0 0.0
        %548 = vmatpush1.msra.mxu0 0.0
        %549 = vmatprep.subr.mxu0 0.0
        %550 = vmatpush1.msra.mxu0 0.0
        %551 = vmatprep.subr.mxu0 0.0
        %552 = vmatpush1.msra.mxu0 0.0
        %553 = vmatprep.subr.mxu0 0.0
        %554 = vmatpush1.msra.mxu0 0.0
        %555 = vmatprep.subr.mxu0 0.0
        %556 = vmatpush1.msra.mxu0 0.0
        %557 = vmatprep.subr.mxu0 0.0
        %558 = vmatpush1.msra.mxu0 0.0
        %559 = vmatprep.subr.mxu0 0.0
        %560 = vmatpush1.msra.mxu0 0.0
        %561 = vmatprep.mubr.f32.mxu0 0.0
        %562 = vmatmul.mubr.f32.gmra.mrb[0].mxu0 %v450
        %v563 = vpop.f32.mrb[0].mxu0
        %v564 = vadd.f32 %v371, %v563
        %v565 = vpop.f32.mrb[0].mxu0
        %v566 = vadd.f32 %v371, %v565
        %567 = vmatprep.mubr.f32.mxu0 0.0
        %568 = vmatmul.mubr.f32.gmra.mrb[0].mxu0 %v453
        %v569 = vpop.f32.mrb[0].mxu0
        %v570 = vadd.f32 %v376, %v569
        %v571 = vpop.f32.mrb[0].mxu0
        %v572 = vadd.f32 %v376, %v571
        %573 = vmatprep.mubr.f32.mxu0 0.0
        %574 = vmatmul.mubr.f32.gmra.mrb[0].mxu0 %v456
        %v575 = vpop.f32.mrb[0].mxu0
        %v576 = vadd.f32 %v381, %v575
        %v577 = vpop.f32.mrb[0].mxu0
        %v578 = vadd.f32 %v381, %v577
        %579 = vmatprep.mubr.f32.mxu0 0.0
        %580 = vmatmul.mubr.f32.gmra.mrb[0].mxu0 %v459
        %v581 = vpop.f32.mrb[0].mxu0
        %v582 = vadd.f32 %v386, %v581
        %v583 = vpop.f32.mrb[0].mxu0
        %v584 = vadd.f32 %v386, %v583
        %585 = vmatprep.mubr.f32.mxu0 0.0
        %586 = vmatmul.mubr.f32.gmra.mrb[0].mxu0 %v462
        %v587 = vpop.f32.mrb[0].mxu0
        %v588 = vadd.f32 %v391, %v587
        %v589 = vpop.f32.mrb[0].mxu0
        %v590 = vadd.f32 %v391, %v589
        %591 = vmatprep.mubr.f32.mxu0 0.0
        %592 = vmatmul.mubr.f32.gmra.mrb[0].mxu0 %v465
        %v593 = vpop.f32.mrb[0].mxu0
        %v594 = vadd.f32 %v396, %v593
        %v595 = vpop.f32.mrb[0].mxu0
        %v596 = vadd.f32 %v396, %v595
        %597 = vmatprep.mubr.f32.mxu0 0.0
        %598 = vmatmul.mubr.f32.gmra.mrb[0].mxu0 %v468
        %v599 = vpop.f32.mrb[0].mxu0
        %v600 = vadd.f32 %v401, %v599
        %v601 = vpop.f32.mrb[0].mxu0
        %v602 = vadd.f32 %v401, %v601
        %603 = vmatprep.mubr.f32.mxu0 0.0
        %604 = vmatmul.mubr.f32.gmra.mrb[0].mxu0 %v471
        %v605 = vpop.f32.mrb[0].mxu0
        %v606 = vadd.f32 %v406, %v605
        %v607 = vpop.f32.mrb[0].mxu0
        %v608 = vadd.f32 %v406, %v607
        %609 = vmatprep.mubr.f32.mxu0 0.0
        %610 = vmatmul.mubr.f32.gmra.mrb[0].mxu0 %v474
        %v611 = vpop.f32.mrb[0].mxu0
        %v612 = vadd.f32 %v411, %v611
        %v613 = vpop.f32.mrb[0].mxu0
        %v614 = vadd.f32 %v411, %v613
        %615 = vmatprep.mubr.f32.mxu0 0.0
        %616 = vmatmul.mubr.f32.gmra.mrb[0].mxu0 %v477
        %v617 = vpop.f32.mrb[0].mxu0
        %v618 = vadd.f32 %v416, %v617
        %v619 = vpop.f32.mrb[0].mxu0
        %v620 = vadd.f32 %v416, %v619
        %621 = vmatprep.mubr.f32.mxu0 0.0
        %622 = vmatmul.mubr.f32.gmra.mrb[0].mxu0 %v480
        %v623 = vpop.f32.mrb[0].mxu0
        %v624 = vadd.f32 %v421, %v623
        %v625 = vpop.f32.mrb[0].mxu0
        %v626 = vadd.f32 %v421, %v625
        %627 = vmatprep.mubr.f32.mxu0 0.0
        %628 = vmatmul.mubr.f32.gmra.mrb[0].mxu0 %v483
        %v629 = vpop.f32.mrb[0].mxu0
        %v630 = vadd.f32 %v426, %v629
        %v631 = vpop.f32.mrb[0].mxu0
        %v632 = vadd.f32 %v426, %v631
        %633 = vmatprep.mubr.f32.mxu0 0.0
        %634 = vmatmul.mubr.f32.gmra.mrb[0].mxu0 %v486
        %v635 = vpop.f32.mrb[0].mxu0
        %v636 = vadd.f32 %v431, %v635
        %v637 = vpop.f32.mrb[0].mxu0
        %v638 = vadd.f32 %v431, %v637
        %639 = vmatprep.mubr.f32.mxu0 0.0
        %640 = vmatmul.mubr.f32.gmra.mrb[0].mxu0 %v489
        %v641 = vpop.f32.mrb[0].mxu0
        %v642 = vadd.f32 %v436, %v641
        %v643 = vpop.f32.mrb[0].mxu0
        %v644 = vadd.f32 %v436, %v643
        %645 = vmatprep.mubr.f32.mxu0 0.0
        %646 = vmatmul.mubr.f32.gmra.mrb[0].mxu0 %v492
        %v647 = vpop.f32.mrb[0].mxu0
        %v648 = vadd.f32 %v441, %v647
        %v649 = vpop.f32.mrb[0].mxu0
        %v650 = vadd.f32 %v441, %v649
        %651 = vmatprep.mubr.f32.mxu0 0.0
        %652 = vmatmul.mubr.f32.gmra.mrb[0].mxu0 %v495
        %v653 = vpop.f32.mrb[0].mxu0
        %v654 = vadd.f32 %v446, %v653
        %v655 = vpop.f32.mrb[0].mxu0
        %v656 = vadd.f32 %v446, %v655
        %657 = vdwg.mxu0
        %v658 = vmax.f32 %v564, 0.0
        %v659 = vmax.f32 %v566, 0.0
        %v660 = vmax.f32 %v570, 0.0
        %v661 = vmax.f32 %v572, 0.0
        %v662 = vmax.f32 %v576, 0.0
        %v663 = vmax.f32 %v578, 0.0
        %v664 = vmax.f32 %v582, 0.0
        %v665 = vmax.f32 %v584, 0.0
        %v666 = vmax.f32 %v588, 0.0
        %v667 = vmax.f32 %v590, 0.0
        %v668 = vmax.f32 %v594, 0.0
        %v669 = vmax.f32 %v596, 0.0
        %v670 = vmax.f32 %v600, 0.0
        %v671 = vmax.f32 %v602, 0.0
        %v672 = vmax.f32 %v606, 0.0
        %v673 = vmax.f32 %v608, 0.0
        %v674 = vmax.f32 %v612, 0.0
        %v675 = vmax.f32 %v614, 0.0
        %v676 = vmax.f32 %v618, 0.0
        %v677 = vmax.f32 %v620, 0.0
        %v678 = vmax.f32 %v624, 0.0
        %v679 = vmax.f32 %v626, 0.0
        %v680 = vmax.f32 %v630, 0.0
        %v681 = vmax.f32 %v632, 0.0
        %v682 = vmax.f32 %v636, 0.0
        %v683 = vmax.f32 %v638, 0.0
        %v684 = vmax.f32 %v642, 0.0
        %v685 = vmax.f32 %v644, 0.0
        %v686 = vmax.f32 %v648, 0.0
        %v687 = vmax.f32 %v650, 0.0
        %v688 = vmax.f32 %v654, 0.0
        %v689 = vmax.f32 %v656, 0.0
        %v690 = vld [vmem:[%s3] sm:$0xff]
        %v691 = vld [vmem:[%s3 + $0x8] sm:$0xff]
        %v692 = vld [vmem:[%s3 + $0x10] sm:$0xff]
        %v693 = vld [vmem:[%s3 + $0x18] sm:$0xff]
        %v694 = vld [vmem:[%s3 + $0x20] sm:$0xff]
        %v695 = vld [vmem:[%s3 + $0x28] sm:$0xff]
        %v696 = vld [vmem:[%s3 + $0x30] sm:$0xff]
        %v697 = vld [vmem:[%s3 + $0x38] sm:$0xff]
        %v698 = vld [vmem:[%s3 + $0x40] sm:$0xff]
        %v699 = vld [vmem:[%s3 + $0x48] sm:$0xff]
        %v700 = vld [vmem:[%s3 + $0x50] sm:$0xff]
        %v701 = vld [vmem:[%s3 + $0x58] sm:$0xff]
        %v702 = vld [vmem:[%s3 + $0x60] sm:$0xff]
        %v703 = vld [vmem:[%s3 + $0x68] sm:$0xff]
        %v704 = vld [vmem:[%s3 + $0x70] sm:$0xff]
        %v705 = vld [vmem:[%s3 + $0x78] sm:$0xff]
        %v706 = vld [vmem:[%s4] sm:$0xff]
        %v707 = vld [vmem:[%s4 + $0x8] sm:$0xff]
        %v708 = vld [vmem:[%s4 + $0x10] sm:$0xff]
        %v709 = vld [vmem:[%s4 + $0x18] sm:$0xff]
        %v710 = vld [vmem:[%s4 + $0x20] sm:$0xff]
        %v711 = vld [vmem:[%s4 + $0x28] sm:$0xff]
        %v712 = vld [vmem:[%s4 + $0x30] sm:$0xff]
        %v713 = vld [vmem:[%s4 + $0x38] sm:$0xff]
        %v714 = vld [vmem:[%s4 + $0x40] sm:$0xff]
        %v715 = vld [vmem:[%s4 + $0x48] sm:$0xff]
        %v716 = vld [vmem:[%s4 + $0x50] sm:$0xff]
        %v717 = vld [vmem:[%s4 + $0x58] sm:$0xff]
        %v718 = vld [vmem:[%s4 + $0x60] sm:$0xff]
        %v719 = vld [vmem:[%s4 + $0x68] sm:$0xff]
        %v720 = vld [vmem:[%s4 + $0x70] sm:$0xff]
        %v721 = vld [vmem:[%s4 + $0x78] sm:$0xff]
        %723 = vset.pattern.permute.xlu0 0
        %724 = vperm.xlu0 %723, %v706
        %v725 = vpop.permute.xlu0 %724
        %728 = vset.pattern.permute.xlu0 0
        %729 = vperm.xlu0 %728, %v707
        %v730 = vpop.permute.xlu0 %729
        %733 = vset.pattern.permute.xlu0 0
        %734 = vperm.xlu0 %733, %v708
        %v735 = vpop.permute.xlu0 %734
        %738 = vset.pattern.permute.xlu0 0
        %739 = vperm.xlu0 %738, %v709
        %v740 = vpop.permute.xlu0 %739
        %743 = vset.pattern.permute.xlu0 0
        %744 = vperm.xlu0 %743, %v710
        %v745 = vpop.permute.xlu0 %744
        %748 = vset.pattern.permute.xlu0 0
        %749 = vperm.xlu0 %748, %v711
        %v750 = vpop.permute.xlu0 %749
        %753 = vset.pattern.permute.xlu0 0
        %754 = vperm.xlu0 %753, %v712
        %v755 = vpop.permute.xlu0 %754
        %758 = vset.pattern.permute.xlu0 0
        %759 = vperm.xlu0 %758, %v713
        %v760 = vpop.permute.xlu0 %759
        %763 = vset.pattern.permute.xlu0 0
        %764 = vperm.xlu0 %763, %v714
        %v765 = vpop.permute.xlu0 %764
        %768 = vset.pattern.permute.xlu0 0
        %769 = vperm.xlu0 %768, %v715
        %v770 = vpop.permute.xlu0 %769
        %773 = vset.pattern.permute.xlu0 0
        %774 = vperm.xlu0 %773, %v716
        %v775 = vpop.permute.xlu0 %774
        %778 = vset.pattern.permute.xlu0 0
        %779 = vperm.xlu0 %778, %v717
        %v780 = vpop.permute.xlu0 %779
        %783 = vset.pattern.permute.xlu0 0
        %784 = vperm.xlu0 %783, %v718
        %v785 = vpop.permute.xlu0 %784
        %788 = vset.pattern.permute.xlu0 0
        %789 = vperm.xlu0 %788, %v719
        %v790 = vpop.permute.xlu0 %789
        %793 = vset.pattern.permute.xlu0 0
        %794 = vperm.xlu0 %793, %v720
        %v795 = vpop.permute.xlu0 %794
        %798 = vset.pattern.permute.xlu0 0
        %799 = vperm.xlu0 %798, %v721
        %v800 = vpop.permute.xlu0 %799
        %802 = vmatprep.subr.mxu0 %v659
        %803 = vmatpush1.msra.mxu0 %v658
        %804 = vmatprep.subr.mxu0 %v661
        %805 = vmatpush1.msra.mxu0 %v660
        %806 = vmatprep.subr.mxu0 %v663
        %807 = vmatpush1.msra.mxu0 %v662
        %808 = vmatprep.subr.mxu0 %v665
        %809 = vmatpush1.msra.mxu0 %v664
        %810 = vmatprep.subr.mxu0 %v667
        %811 = vmatpush1.msra.mxu0 %v666
        %812 = vmatprep.subr.mxu0 %v669
        %813 = vmatpush1.msra.mxu0 %v668
        %814 = vmatprep.subr.mxu0 %v671
        %815 = vmatpush1.msra.mxu0 %v670
        %816 = vmatprep.subr.mxu0 %v673
        %817 = vmatpush1.msra.mxu0 %v672
        %818 = vmatprep.subr.mxu0 %v675
        %819 = vmatpush1.msra.mxu0 %v674
        %820 = vmatprep.subr.mxu0 %v677
        %821 = vmatpush1.msra.mxu0 %v676
        %822 = vmatprep.subr.mxu0 %v679
        %823 = vmatpush1.msra.mxu0 %v678
        %824 = vmatprep.subr.mxu0 %v681
        %825 = vmatpush1.msra.mxu0 %v680
        %826 = vmatprep.subr.mxu0 %v683
        %827 = vmatpush1.msra.mxu0 %v682
        %828 = vmatprep.subr.mxu0 %v685
        %829 = vmatpush1.msra.mxu0 %v684
        %830 = vmatprep.subr.mxu0 %v687
        %831 = vmatpush1.msra.mxu0 %v686
        %832 = vmatprep.subr.mxu0 %v689
        %833 = vmatpush1.msra.mxu0 %v688
        %834 = vmatprep.subr.mxu0 0.0
        %835 = vmatpush1.msra.mxu0 0.0
        %836 = vmatprep.subr.mxu0 0.0
        %837 = vmatpush1.msra.mxu0 0.0
        %838 = vmatprep.subr.mxu0 0.0
        %839 = vmatpush1.msra.mxu0 0.0
        %840 = vmatprep.subr.mxu0 0.0
        %841 = vmatpush1.msra.mxu0 0.0
        %842 = vmatprep.subr.mxu0 0.0
        %843 = vmatpush1.msra.mxu0 0.0
        %844 = vmatprep.subr.mxu0 0.0
        %845 = vmatpush1.msra.mxu0 0.0
        %846 = vmatprep.subr.mxu0 0.0
        %847 = vmatpush1.msra.mxu0 0.0
        %848 = vmatprep.subr.mxu0 0.0
        %849 = vmatpush1.msra.mxu0 0.0
        %850 = vmatprep.subr.mxu0 0.0
        %851 = vmatpush1.msra.mxu0 0.0
        %852 = vmatprep.subr.mxu0 0.0
        %853 = vmatpush1.msra.mxu0 0.0
        %854 = vmatprep.subr.mxu0 0.0
        %855 = vmatpush1.msra.mxu0 0.0
        %856 = vmatprep.subr.mxu0 0.0
        %857 = vmatpush1.msra.mxu0 0.0
        %858 = vmatprep.subr.mxu0 0.0
        %859 = vmatpush1.msra.mxu0 0.0
        %860 = vmatprep.subr.mxu0 0.0
        %861 = vmatpush1.msra.mxu0 0.0
        %862 = vmatprep.subr.mxu0 0.0
        %863 = vmatpush1.msra.mxu0 0.0
        %864 = vmatprep.subr.mxu0 0.0
        %865 = vmatpush1.msra.mxu0 0.0
        %866 = vmatprep.mubr.f32.mxu0 0.0
        %867 = vmatmul.mubr.f32.gmra.mrb[0].mxu0 %v690
        %v868 = vpop.f32.mrb[0].mxu0
        %v869 = vadd.f32 %v725, %v868
        %v870 = vpop.f32.mrb[0].mxu0
        %v871 = vadd.f32 %v725, %v870
        %872 = vmatprep.mubr.f32.mxu0 0.0
        %873 = vmatmul.mubr.f32.gmra.mrb[0].mxu0 %v691
        %v874 = vpop.f32.mrb[0].mxu0
        %v875 = vadd.f32 %v730, %v874
        %v876 = vpop.f32.mrb[0].mxu0
        %v877 = vadd.f32 %v730, %v876
        %878 = vmatprep.mubr.f32.mxu0 0.0
        %879 = vmatmul.mubr.f32.gmra.mrb[0].mxu0 %v692
        %v880 = vpop.f32.mrb[0].mxu0
        %v881 = vadd.f32 %v735, %v880
        %v882 = vpop.f32.mrb[0].mxu0
        %v883 = vadd.f32 %v735, %v882
        %884 = vmatprep.mubr.f32.mxu0 0.0
        %885 = vmatmul.mubr.f32.gmra.mrb[0].mxu0 %v693
        %v886 = vpop.f32.mrb[0].mxu0
        %v887 = vadd.f32 %v740, %v886
        %v888 = vpop.f32.mrb[0].mxu0
        %v889 = vadd.f32 %v740, %v888
        %890 = vmatprep.mubr.f32.mxu0 0.0
        %891 = vmatmul.mubr.f32.gmra.mrb[0].mxu0 %v694
        %v892 = vpop.f32.mrb[0].mxu0
        %v893 = vadd.f32 %v745, %v892
        %v894 = vpop.f32.mrb[0].mxu0
        %v895 = vadd.f32 %v745, %v894
        %896 = vmatprep.mubr.f32.mxu0 0.0
        %897 = vmatmul.mubr.f32.gmra.mrb[0].mxu0 %v695
        %v898 = vpop.f32.mrb[0].mxu0
        %v899 = vadd.f32 %v750, %v898
        %v900 = vpop.f32.mrb[0].mxu0
        %v901 = vadd.f32 %v750, %v900
        %902 = vmatprep.mubr.f32.mxu0 0.0
        %903 = vmatmul.mubr.f32.gmra.mrb[0].mxu0 %v696
        %v904 = vpop.f32.mrb[0].mxu0
        %v905 = vadd.f32 %v755, %v904
        %v906 = vpop.f32.mrb[0].mxu0
        %v907 = vadd.f32 %v755, %v906
        %908 = vmatprep.mubr.f32.mxu0 0.0
        %909 = vmatmul.mubr.f32.gmra.mrb[0].mxu0 %v697
        %v910 = vpop.f32.mrb[0].mxu0
        %v911 = vadd.f32 %v760, %v910
        %v912 = vpop.f32.mrb[0].mxu0
        %v913 = vadd.f32 %v760, %v912
        %914 = vmatprep.mubr.f32.mxu0 0.0
        %915 = vmatmul.mubr.f32.gmra.mrb[0].mxu0 %v698
        %v916 = vpop.f32.mrb[0].mxu0
        %v917 = vadd.f32 %v765, %v916
        %v918 = vpop.f32.mrb[0].mxu0
        %v919 = vadd.f32 %v765, %v918
        %920 = vmatprep.mubr.f32.mxu0 0.0
        %921 = vmatmul.mubr.f32.gmra.mrb[0].mxu0 %v699
        %v922 = vpop.f32.mrb[0].mxu0
        %v923 = vadd.f32 %v770, %v922
        %v924 = vpop.f32.mrb[0].mxu0
        %v925 = vadd.f32 %v770, %v924
        %926 = vmatprep.mubr.f32.mxu0 0.0
        %927 = vmatmul.mubr.f32.gmra.mrb[0].mxu0 %v700
        %v928 = vpop.f32.mrb[0].mxu0
        %v929 = vadd.f32 %v775, %v928
        %v930 = vpop.f32.mrb[0].mxu0
        %v931 = vadd.f32 %v775, %v930
        %932 = vmatprep.mubr.f32.mxu0 0.0
        %933 = vmatmul.mubr.f32.gmra.mrb[0].mxu0 %v701
        %v934 = vpop.f32.mrb[0].mxu0
        %v935 = vadd.f32 %v780, %v934
        %v936 = vpop.f32.mrb[0].mxu0
        %v937 = vadd.f32 %v780, %v936
        %938 = vmatprep.mubr.f32.mxu0 0.0
        %939 = vmatmul.mubr.f32.gmra.mrb[0].mxu0 %v702
        %v940 = vpop.f32.mrb[0].mxu0
        %v941 = vadd.f32 %v785, %v940
        %v942 = vpop.f32.mrb[0].mxu0
        %v943 = vadd.f32 %v785, %v942
        %944 = vmatprep.mubr.f32.mxu0 0.0
        %945 = vmatmul.mubr.f32.gmra.mrb[0].mxu0 %v703
        %v946 = vpop.f32.mrb[0].mxu0
        %v947 = vadd.f32 %v790, %v946
        %v948 = vpop.f32.mrb[0].mxu0
        %v949 = vadd.f32 %v790, %v948
        %950 = vmatprep.mubr.f32.mxu0 0.0
        %951 = vmatmul.mubr.f32.gmra.mrb[0].mxu0 %v704
        %v952 = vpop.f32.mrb[0].mxu0
        %v953 = vadd.f32 %v795, %v952
        %v954 = vpop.f32.mrb[0].mxu0
        %v955 = vadd.f32 %v795, %v954
        %956 = vmatprep.mubr.f32.mxu0 0.0
        %957 = vmatmul.mubr.f32.gmra.mrb[0].mxu0 %v705
        %v958 = vpop.f32.mrb[0].mxu0
        %v959 = vadd.f32 %v800, %v958
        %v960 = vpop.f32.mrb[0].mxu0
        %v961 = vadd.f32 %v800, %v960
        %962 = vdwg.mxu0
        %v963 = vmax.f32 %v869, 0.0
        %v964 = vmax.f32 %v871, 0.0
        %v965 = vmax.f32 %v875, 0.0
        %v966 = vmax.f32 %v877, 0.0
        %v967 = vmax.f32 %v881, 0.0
        %v968 = vmax.f32 %v883, 0.0
        %v969 = vmax.f32 %v887, 0.0
        %v970 = vmax.f32 %v889, 0.0
        %v971 = vmax.f32 %v893, 0.0
        %v972 = vmax.f32 %v895, 0.0
        %v973 = vmax.f32 %v899, 0.0
        %v974 = vmax.f32 %v901, 0.0
        %v975 = vmax.f32 %v905, 0.0
        %v976 = vmax.f32 %v907, 0.0
        %v977 = vmax.f32 %v911, 0.0
        %v978 = vmax.f32 %v913, 0.0
        %v979 = vmax.f32 %v917, 0.0
        %v980 = vmax.f32 %v919, 0.0
        %v981 = vmax.f32 %v923, 0.0
        %v982 = vmax.f32 %v925, 0.0
        %v983 = vmax.f32 %v929, 0.0
        %v984 = vmax.f32 %v931, 0.0
        %v985 = vmax.f32 %v935, 0.0
        %v986 = vmax.f32 %v937, 0.0
        %v987 = vmax.f32 %v941, 0.0
        %v988 = vmax.f32 %v943, 0.0
        %v989 = vmax.f32 %v947, 0.0
        %v990 = vmax.f32 %v949, 0.0
        %v991 = vmax.f32 %v953, 0.0
        %v992 = vmax.f32 %v955, 0.0
        %v993 = vmax.f32 %v959, 0.0
        %v994 = vmax.f32 %v961, 0.0
        %v995 = vld [vmem:[%s5] sm:$0xff]
        %v996 = vld [vmem:[%s5 + $0x8] sm:$0xff]
        %v997 = vld [vmem:[%s5 + $0x10] sm:$0xff]
        %v998 = vld [vmem:[%s5 + $0x18] sm:$0xff]
        %v999 = vld [vmem:[%s5 + $0x20] sm:$0xff]
        %v1000 = vld [vmem:[%s5 + $0x28] sm:$0xff]
        %v1001 = vld [vmem:[%s5 + $0x30] sm:$0xff]
        %v1002 = vld [vmem:[%s5 + $0x38] sm:$0xff]
        %v1003 = vld [vmem:[%s5 + $0x40] sm:$0xff]
        %v1004 = vld [vmem:[%s5 + $0x48] sm:$0xff]
        %v1005 = vld [vmem:[%s5 + $0x50] sm:$0xff]
        %v1006 = vld [vmem:[%s5 + $0x58] sm:$0xff]
        %v1007 = vld [vmem:[%s5 + $0x60] sm:$0xff]
        %v1008 = vld [vmem:[%s5 + $0x68] sm:$0xff]
        %v1009 = vld [vmem:[%s5 + $0x70] sm:$0xff]
        %v1010 = vld [vmem:[%s5 + $0x78] sm:$0xff]
        %v1011 = vld [vmem:[%s6] sm:$0xff]
        %v1012 = vld [vmem:[%s6 + $0x8] sm:$0xff]
        %v1013 = vld [vmem:[%s6 + $0x10] sm:$0xff]
        %v1014 = vld [vmem:[%s6 + $0x18] sm:$0xff]
        %v1015 = vld [vmem:[%s6 + $0x20] sm:$0xff]
        %v1016 = vld [vmem:[%s6 + $0x28] sm:$0xff]
        %v1017 = vld [vmem:[%s6 + $0x30] sm:$0xff]
        %v1018 = vld [vmem:[%s6 + $0x38] sm:$0xff]
        %v1019 = vld [vmem:[%s6 + $0x40] sm:$0xff]
        %v1020 = vld [vmem:[%s6 + $0x48] sm:$0xff]
        %v1021 = vld [vmem:[%s6 + $0x50] sm:$0xff]
        %v1022 = vld [vmem:[%s6 + $0x58] sm:$0xff]
        %v1023 = vld [vmem:[%s6 + $0x60] sm:$0xff]
        %v1024 = vld [vmem:[%s6 + $0x68] sm:$0xff]
        %v1025 = vld [vmem:[%s6 + $0x70] sm:$0xff]
        %v1026 = vld [vmem:[%s6 + $0x78] sm:$0xff]
        %1028 = vset.pattern.permute.xlu0 0
        %1029 = vperm.xlu0 %1028, %v1011
        %v1030 = vpop.permute.xlu0 %1029
        %1033 = vset.pattern.permute.xlu0 0
        %1034 = vperm.xlu0 %1033, %v1012
        %v1035 = vpop.permute.xlu0 %1034
        %1038 = vset.pattern.permute.xlu0 0
        %1039 = vperm.xlu0 %1038, %v1013
        %v1040 = vpop.permute.xlu0 %1039
        %1043 = vset.pattern.permute.xlu0 0
        %1044 = vperm.xlu0 %1043, %v1014
        %v1045 = vpop.permute.xlu0 %1044
        %1048 = vset.pattern.permute.xlu0 0
        %1049 = vperm.xlu0 %1048, %v1015
        %v1050 = vpop.permute.xlu0 %1049
        %1053 = vset.pattern.permute.xlu0 0
        %1054 = vperm.xlu0 %1053, %v1016
        %v1055 = vpop.permute.xlu0 %1054
        %1058 = vset.pattern.permute.xlu0 0
        %1059 = vperm.xlu0 %1058, %v1017
        %v1060 = vpop.permute.xlu0 %1059
        %1063 = vset.pattern.permute.xlu0 0
        %1064 = vperm.xlu0 %1063, %v1018
        %v1065 = vpop.permute.xlu0 %1064
        %1068 = vset.pattern.permute.xlu0 0
        %1069 = vperm.xlu0 %1068, %v1019
        %v1070 = vpop.permute.xlu0 %1069
        %1073 = vset.pattern.permute.xlu0 0
        %1074 = vperm.xlu0 %1073, %v1020
        %v1075 = vpop.permute.xlu0 %1074
        %1078 = vset.pattern.permute.xlu0 0
        %1079 = vperm.xlu0 %1078, %v1021
        %v1080 = vpop.permute.xlu0 %1079
        %1083 = vset.pattern.permute.xlu0 0
        %1084 = vperm.xlu0 %1083, %v1022
        %v1085 = vpop.permute.xlu0 %1084
        %1088 = vset.pattern.permute.xlu0 0
        %1089 = vperm.xlu0 %1088, %v1023
        %v1090 = vpop.permute.xlu0 %1089
        %1093 = vset.pattern.permute.xlu0 0
        %1094 = vperm.xlu0 %1093, %v1024
        %v1095 = vpop.permute.xlu0 %1094
        %1098 = vset.pattern.permute.xlu0 0
        %1099 = vperm.xlu0 %1098, %v1025
        %v1100 = vpop.permute.xlu0 %1099
        %1103 = vset.pattern.permute.xlu0 0
        %1104 = vperm.xlu0 %1103, %v1026
        %v1105 = vpop.permute.xlu0 %1104
        %1107 = vmatprep.subr.mxu0 %v964
        %1108 = vmatpush1.msra.mxu0 %v963
        %1109 = vmatprep.subr.mxu0 %v966
        %1110 = vmatpush1.msra.mxu0 %v965
        %1111 = vmatprep.subr.mxu0 %v968
        %1112 = vmatpush1.msra.mxu0 %v967
        %1113 = vmatprep.subr.mxu0 %v970
        %1114 = vmatpush1.msra.mxu0 %v969
        %1115 = vmatprep.subr.mxu0 %v972
        %1116 = vmatpush1.msra.mxu0 %v971
        %1117 = vmatprep.subr.mxu0 %v974
        %1118 = vmatpush1.msra.mxu0 %v973
        %1119 = vmatprep.subr.mxu0 %v976
        %1120 = vmatpush1.msra.mxu0 %v975
        %1121 = vmatprep.subr.mxu0 %v978
        %1122 = vmatpush1.msra.mxu0 %v977
        %1123 = vmatprep.subr.mxu0 %v980
        %1124 = vmatpush1.msra.mxu0 %v979
        %1125 = vmatprep.subr.mxu0 %v982
        %1126 = vmatpush1.msra.mxu0 %v981
        %1127 = vmatprep.subr.mxu0 %v984
        %1128 = vmatpush1.msra.mxu0 %v983
        %1129 = vmatprep.subr.mxu0 %v986
        %1130 = vmatpush1.msra.mxu0 %v985
        %1131 = vmatprep.subr.mxu0 %v988
        %1132 = vmatpush1.msra.mxu0 %v987
        %1133 = vmatprep.subr.mxu0 %v990
        %1134 = vmatpush1.msra.mxu0 %v989
        %1135 = vmatprep.subr.mxu0 %v992
        %1136 = vmatpush1.msra.mxu0 %v991
        %1137 = vmatprep.subr.mxu0 %v994
        %1138 = vmatpush1.msra.mxu0 %v993
        %1139 = vmatprep.subr.mxu0 0.0
        %1140 = vmatpush1.msra.mxu0 0.0
        %1141 = vmatprep.subr.mxu0 0.0
        %1142 = vmatpush1.msra.mxu0 0.0
        %1143 = vmatprep.subr.mxu0 0.0
        %1144 = vmatpush1.msra.mxu0 0.0
        %1145 = vmatprep.subr.mxu0 0.0
        %1146 = vmatpush1.msra.mxu0 0.0
        %1147 = vmatprep.subr.mxu0 0.0
        %1148 = vmatpush1.msra.mxu0 0.0
        %1149 = vmatprep.subr.mxu0 0.0
        %1150 = vmatpush1.msra.mxu0 0.0
        %1151 = vmatprep.subr.mxu0 0.0
        %1152 = vmatpush1.msra.mxu0 0.0
        %1153 = vmatprep.subr.mxu0 0.0
        %1154 = vmatpush1.msra.mxu0 0.0
        %1155 = vmatprep.subr.mxu0 0.0
        %1156 = vmatpush1.msra.mxu0 0.0
        %1157 = vmatprep.subr.mxu0 0.0
        %1158 = vmatpush1.msra.mxu0 0.0
        %1159 = vmatprep.subr.mxu0 0.0
        %1160 = vmatpush1.msra.mxu0 0.0
        %1161 = vmatprep.subr.mxu0 0.0
        %1162 = vmatpush1.msra.mxu0 0.0
        %1163 = vmatprep.subr.mxu0 0.0
        %1164 = vmatpush1.msra.mxu0 0.0
        %1165 = vmatprep.subr.mxu0 0.0
        %1166 = vmatpush1.msra.mxu0 0.0
        %1167 = vmatprep.subr.mxu0 0.0
        %1168 = vmatpush1.msra.mxu0 0.0
        %1169 = vmatprep.subr.mxu0 0.0
        %1170 = vmatpush1.msra.mxu0 0.0
        %1171 = vmatprep.mubr.f32.mxu0 0.0
        %1172 = vmatmul.mubr.f32.gmra.mrb[0].mxu0 %v995
        %v1173 = vpop.f32.mrb[0].mxu0
        %v1174 = vadd.f32 %v1030, %v1173
        %v1175 = vpop.f32.mrb[0].mxu0
        %v1176 = vadd.f32 %v1030, %v1175
        %1177 = vmatprep.mubr.f32.mxu0 0.0
        %1178 = vmatmul.mubr.f32.gmra.mrb[0].mxu0 %v996
        %v1179 = vpop.f32.mrb[0].mxu0
        %v1180 = vadd.f32 %v1035, %v1179
        %v1181 = vpop.f32.mrb[0].mxu0
        %v1182 = vadd.f32 %v1035, %v1181
        %1183 = vmatprep.mubr.f32.mxu0 0.0
        %1184 = vmatmul.mubr.f32.gmra.mrb[0].mxu0 %v997
        %v1185 = vpop.f32.mrb[0].mxu0
        %v1186 = vadd.f32 %v1040, %v1185
        %v1187 = vpop.f32.mrb[0].mxu0
        %v1188 = vadd.f32 %v1040, %v1187
        %1189 = vmatprep.mubr.f32.mxu0 0.0
        %1190 = vmatmul.mubr.f32.gmra.mrb[0].mxu0 %v998
        %v1191 = vpop.f32.mrb[0].mxu0
        %v1192 = vadd.f32 %v1045, %v1191
        %v1193 = vpop.f32.mrb[0].mxu0
        %v1194 = vadd.f32 %v1045, %v1193
        %1195 = vmatprep.mubr.f32.mxu0 0.0
        %1196 = vmatmul.mubr.f32.gmra.mrb[0].mxu0 %v999
        %v1197 = vpop.f32.mrb[0].mxu0
        %v1198 = vadd.f32 %v1050, %v1197
        %v1199 = vpop.f32.mrb[0].mxu0
        %v1200 = vadd.f32 %v1050, %v1199
        %1201 = vmatprep.mubr.f32.mxu0 0.0
        %1202 = vmatmul.mubr.f32.gmra.mrb[0].mxu0 %v1000
        %v1203 = vpop.f32.mrb[0].mxu0
        %v1204 = vadd.f32 %v1055, %v1203
        %v1205 = vpop.f32.mrb[0].mxu0
        %v1206 = vadd.f32 %v1055, %v1205
        %1207 = vmatprep.mubr.f32.mxu0 0.0
        %1208 = vmatmul.mubr.f32.gmra.mrb[0].mxu0 %v1001
        %v1209 = vpop.f32.mrb[0].mxu0
        %v1210 = vadd.f32 %v1060, %v1209
        %v1211 = vpop.f32.mrb[0].mxu0
        %v1212 = vadd.f32 %v1060, %v1211
        %1213 = vmatprep.mubr.f32.mxu0 0.0
        %1214 = vmatmul.mubr.f32.gmra.mrb[0].mxu0 %v1002
        %v1215 = vpop.f32.mrb[0].mxu0
        %v1216 = vadd.f32 %v1065, %v1215
        %v1217 = vpop.f32.mrb[0].mxu0
        %v1218 = vadd.f32 %v1065, %v1217
        %1219 = vmatprep.mubr.f32.mxu0 0.0
        %1220 = vmatmul.mubr.f32.gmra.mrb[0].mxu0 %v1003
        %v1221 = vpop.f32.mrb[0].mxu0
        %v1222 = vadd.f32 %v1070, %v1221
        %v1223 = vpop.f32.mrb[0].mxu0
        %v1224 = vadd.f32 %v1070, %v1223
        %1225 = vmatprep.mubr.f32.mxu0 0.0
        %1226 = vmatmul.mubr.f32.gmra.mrb[0].mxu0 %v1004
        %v1227 = vpop.f32.mrb[0].mxu0
        %v1228 = vadd.f32 %v1075, %v1227
        %v1229 = vpop.f32.mrb[0].mxu0
        %v1230 = vadd.f32 %v1075, %v1229
        %1231 = vmatprep.mubr.f32.mxu0 0.0
        %1232 = vmatmul.mubr.f32.gmra.mrb[0].mxu0 %v1005
        %v1233 = vpop.f32.mrb[0].mxu0
        %v1234 = vadd.f32 %v1080, %v1233
        %v1235 = vpop.f32.mrb[0].mxu0
        %v1236 = vadd.f32 %v1080, %v1235
        %1237 = vmatprep.mubr.f32.mxu0 0.0
        %1238 = vmatmul.mubr.f32.gmra.mrb[0].mxu0 %v1006
        %v1239 = vpop.f32.mrb[0].mxu0
        %v1240 = vadd.f32 %v1085, %v1239
        %v1241 = vpop.f32.mrb[0].mxu0
        %v1242 = vadd.f32 %v1085, %v1241
        %1243 = vmatprep.mubr.f32.mxu0 0.0
        %1244 = vmatmul.mubr.f32.gmra.mrb[0].mxu0 %v1007
        %v1245 = vpop.f32.mrb[0].mxu0
        %v1246 = vadd.f32 %v1090, %v1245
        %v1247 = vpop.f32.mrb[0].mxu0
        %v1248 = vadd.f32 %v1090, %v1247
        %1249 = vmatprep.mubr.f32.mxu0 0.0
        %1250 = vmatmul.mubr.f32.gmra.mrb[0].mxu0 %v1008
        %v1251 = vpop.f32.mrb[0].mxu0
        %v1252 = vadd.f32 %v1095, %v1251
        %v1253 = vpop.f32.mrb[0].mxu0
        %v1254 = vadd.f32 %v1095, %v1253
        %1255 = vmatprep.mubr.f32.mxu0 0.0
        %1256 = vmatmul.mubr.f32.gmra.mrb[0].mxu0 %v1009
        %v1257 = vpop.f32.mrb[0].mxu0
        %v1258 = vadd.f32 %v1100, %v1257
        %v1259 = vpop.f32.mrb[0].mxu0
        %v1260 = vadd.f32 %v1100, %v1259
        %1261 = vmatprep.mubr.f32.mxu0 0.0
        %1262 = vmatmul.mubr.f32.gmra.mrb[0].mxu0 %v1010
        %v1263 = vpop.f32.mrb[0].mxu0
        %v1264 = vadd.f32 %v1105, %v1263
        %v1265 = vpop.f32.mrb[0].mxu0
        %v1266 = vadd.f32 %v1105, %v1265
        %1267 = vdwg.mxu0
        %v1268 = vmax.f32 %v1174, 0.0
        %v1269 = vmax.f32 %v1176, 0.0
        %v1270 = vmax.f32 %v1180, 0.0
        %v1271 = vmax.f32 %v1182, 0.0
        %v1272 = vmax.f32 %v1186, 0.0
        %v1273 = vmax.f32 %v1188, 0.0
        %v1274 = vmax.f32 %v1192, 0.0
        %v1275 = vmax.f32 %v1194, 0.0
        %v1276 = vmax.f32 %v1198, 0.0
        %v1277 = vmax.f32 %v1200, 0.0
        %v1278 = vmax.f32 %v1204, 0.0
        %v1279 = vmax.f32 %v1206, 0.0
        %v1280 = vmax.f32 %v1210, 0.0
        %v1281 = vmax.f32 %v1212, 0.0
        %v1282 = vmax.f32 %v1216, 0.0
        %v1283 = vmax.f32 %v1218, 0.0
        %v1284 = vmax.f32 %v1222, 0.0
        %v1285 = vmax.f32 %v1224, 0.0
        %v1286 = vmax.f32 %v1228, 0.0
        %v1287 = vmax.f32 %v1230, 0.0
        %v1288 = vmax.f32 %v1234, 0.0
        %v1289 = vmax.f32 %v1236, 0.0
        %v1290 = vmax.f32 %v1240, 0.0
        %v1291 = vmax.f32 %v1242, 0.0
        %v1292 = vmax.f32 %v1246, 0.0
        %v1293 = vmax.f32 %v1248, 0.0
        %v1294 = vmax.f32 %v1252, 0.0
        %v1295 = vmax.f32 %v1254, 0.0
        %v1296 = vmax.f32 %v1258, 0.0
        %v1297 = vmax.f32 %v1260, 0.0
        %v1298 = vmax.f32 %v1264, 0.0
        %v1299 = vmax.f32 %v1266, 0.0
        %v1300 = vld [vmem:[%s7] sm:$0xff]
        %v1301 = vld [vmem:[%s8] sm:$0xff]
        %1303 = vset.pattern.permute.xlu0 0
        %1304 = vperm.xlu0 %1303, %v1301
        %v1305 = vpop.permute.xlu0 %1304
        %1307 = vmatprep.subr.mxu0 %v1269
        %1308 = vmatpush1.msra.mxu0 %v1268
        %1309 = vmatprep.subr.mxu0 %v1271
        %1310 = vmatpush1.msra.mxu0 %v1270
        %1311 = vmatprep.subr.mxu0 %v1273
        %1312 = vmatpush1.msra.mxu0 %v1272
        %1313 = vmatprep.subr.mxu0 %v1275
        %1314 = vmatpush1.msra.mxu0 %v1274
        %1315 = vmatprep.subr.mxu0 %v1277
        %1316 = vmatpush1.msra.mxu0 %v1276
        %1317 = vmatprep.subr.mxu0 %v1279
        %1318 = vmatpush1.msra.mxu0 %v1278
        %1319 = vmatprep.subr.mxu0 %v1281
        %1320 = vmatpush1.msra.mxu0 %v1280
        %1321 = vmatprep.subr.mxu0 %v1283
        %1322 = vmatpush1.msra.mxu0 %v1282
        %1323 = vmatprep.subr.mxu0 %v1285
        %1324 = vmatpush1.msra.mxu0 %v1284
        %1325 = vmatprep.subr.mxu0 %v1287
        %1326 = vmatpush1.msra.mxu0 %v1286
        %1327 = vmatprep.subr.mxu0 %v1289
        %1328 = vmatpush1.msra.mxu0 %v1288
        %1329 = vmatprep.subr.mxu0 %v1291
        %1330 = vmatpush1.msra.mxu0 %v1290
        %1331 = vmatprep.subr.mxu0 %v1293
        %1332 = vmatpush1.msra.mxu0 %v1292
        %1333 = vmatprep.subr.mxu0 %v1295
        %1334 = vmatpush1.msra.mxu0 %v1294
        %1335 = vmatprep.subr.mxu0 %v1297
        %1336 = vmatpush1.msra.mxu0 %v1296
        %1337 = vmatprep.subr.mxu0 %v1299
        %1338 = vmatpush1.msra.mxu0 %v1298
        %1339 = vmatprep.subr.mxu0 0.0
        %1340 = vmatpush1.msra.mxu0 0.0
        %1341 = vmatprep.subr.mxu0 0.0
        %1342 = vmatpush1.msra.mxu0 0.0
        %1343 = vmatprep.subr.mxu0 0.0
        %1344 = vmatpush1.msra.mxu0 0.0
        %1345 = vmatprep.subr.mxu0 0.0
        %1346 = vmatpush1.msra.mxu0 0.0
        %1347 = vmatprep.subr.mxu0 0.0
        %1348 = vmatpush1.msra.mxu0 0.0
        %1349 = vmatprep.subr.mxu0 0.0
        %1350 = vmatpush1.msra.mxu0 0.0
        %1351 = vmatprep.subr.mxu0 0.0
        %1352 = vmatpush1.msra.mxu0 0.0
        %1353 = vmatprep.subr.mxu0 0.0
        %1354 = vmatpush1.msra.mxu0 0.0
        %1355 = vmatprep.subr.mxu0 0.0
        %1356 = vmatpush1.msra.mxu0 0.0
        %1357 = vmatprep.subr.mxu0 0.0
        %1358 = vmatpush1.msra.mxu0 0.0
        %1359 = vmatprep.subr.mxu0 0.0
        %1360 = vmatpush1.msra.mxu0 0.0
        %1361 = vmatprep.subr.mxu0 0.0
        %1362 = vmatpush1.msra.mxu0 0.0
        %1363 = vmatprep.subr.mxu0 0.0
        %1364 = vmatpush1.msra.mxu0 0.0
        %1365 = vmatprep.subr.mxu0 0.0
        %1366 = vmatpush1.msra.mxu0 0.0
        %1367 = vmatprep.subr.mxu0 0.0
        %1368 = vmatpush1.msra.mxu0 0.0
        %1369 = vmatprep.subr.mxu0 0.0
        %1370 = vmatpush1.msra.mxu0 0.0
        %1371 = vmatprep.mubr.f32.mxu0 0.0
        %1372 = vmatmul.mubr.f32.gmra.mrb[0].mxu0 %v1300
        %v1373 = vpop.f32.mrb[0].mxu0
        %v1374 = vadd.f32 %v1305, %v1373
        %v1375 = vpop.f32.mrb[0].mxu0
        %v1376 = vadd.f32 %v1305, %v1375
        %1377 = vdwg.mxu0
        %1378 = vst [vmem:[%s326] sm:$0xff] %v1374
        %1379 = vst [vmem:[%s326 + $0x8] sm:$0xff] %v1376
        %s1380 = sand.u32 %s225, 1
        %s1381 = scalar_lea.sflag [#allocation3], %s1380
        %s1382 = sand.u32 %s225, 1
        %s1383 = smul.addr %s1382, 16
        %s1384 = scalar_lea.vmem [#allocation2], %s1383
        // Predicated region
        $region57: #{tpu_custom_call.1} parent=55 // pred_check
          %p1385 = pneg %p235
        $region58: #{tpu_custom_call.1} parent=55 // pred_check_branch
          %1387 = sbr.rel (%p1385) target = $region60
        $region59: #{tpu_custom_call.1} parent=55 // pred_region
          %s1388 = smul.u32 2, %s23
          %s1390 = ssub.s32 256, 256
          %1391 = vsyncadd %s1381, %s1390
          %s1392 = smul.addr %s1388, 128
          %s1393 = scalar_lea.hbm %s9, %s1392
          %s1395 = sshll.u32 %s1384, 4
          %s1396 = int_to_ptr.vmem [resolvable:$true] %s1395
          %1398 = dma.vmem_to_hbm [thread:$0]  %s1396, 256, %s1393, %s1381
        $region60: #{tpu_custom_call.1} parent=55 // pred_fallthru
          _
      $region56: #{tpu_custom_call.1} parent=5 // pred_fallthru
        _
      %p1399 = scmp.le.s32.totalorder 2, %s18
      // Predicated region
      $region61: #{tpu_custom_call.1} parent=5 // pred_check
        %p1400 = pneg %p1399
      $region62: #{tpu_custom_call.1} parent=5 // pred_check_branch
        %1402 = sbr.rel (%p1400) target = $region64
      $region63: #{tpu_custom_call.1} parent=5 // pred_region
        %s1403 = ssub.s32 %s18, 2
        // Predicated region
        $region65: #{tpu_custom_call.1} parent=63 // pred_check
          %p1404 = pneg %p241
        $region66: #{tpu_custom_call.1} parent=63 // pred_check_branch
          %1406 = sbr.rel (%p1404) target = $region68
        $region67: #{tpu_custom_call.1} parent=63 // pred_region
          %s1407 = sand.u32 %s226, 1
          %s1408 = scalar_lea.sflag [#allocation3], %s1407
          %s1409 = sand.u32 %s226, 1
          %s1410 = smul.addr %s1409, 16
          %s1411 = scalar_lea.vmem [#allocation2], %s1410
          %1412 = dma.done %s1408, 256
        $region68: #{tpu_custom_call.1} parent=63 // pred_fallthru
          _
      $region64: #{tpu_custom_call.1} parent=5 // pred_fallthru
        _
    $region6: #{tpu_custom_call.1} parent=1 // loop_footer
      %s22 = sadd.s32 1, %s18
    $region7: #{tpu_custom_call.1} parent=1 // loop_footer_branch
      %17 = sbr.rel target = $region3
    $region8: #{tpu_custom_call.1} parent=1 // loop_exit
      _
    %1413 = vsyncpa [#allocation3], 1
    %s1414 = scalar_lea.sflag [#allocation3], 1
    %1415 = vsyncpa %s1414, 1

</llo_original>
